<compile_context>
chip_gen: v6e
topology: v6e:2x2x1
jax: 0.10.0
libtpu: 0.0.40
codegen_flags: <defaults>
</compile_context>

<pallas_src>
import functools
import math

import jax
import jax.numpy as jnp
import numpy as np
from jax.experimental import pallas as pl
from jax.experimental.pallas import tpu as pltpu


def _round_up(x, m):
    return ((x + m - 1) // m) * m


# ---------------------------------------------------------------------------
# Kernel 1: fused Q|K|V projection (row-tiled, lane-dense RHS).
# ---------------------------------------------------------------------------
def qkv_proj_kernel(x_ref, w_ref, qkv_ref):
    # x_ref: [TR, D] bf16, w_ref: [D, 3*H*dk] bf16 (W_Q already scaled by 1/sqrt(dk))
    qkv_ref[...] = jnp.dot(
        x_ref[...], w_ref[...], preferred_element_type=jnp.float32
    ).astype(qkv_ref.dtype)


# ---------------------------------------------------------------------------
# Kernel 2: head-batched flash attention + fc, online softmax over KV tiles.
# ---------------------------------------------------------------------------
def attn_kernel(q_ref, k_ref, v_ref, wo_ref, out_ref, m_sc, l_sc, acc_sc, *,
                seq_len, block_kv, mask_kv):
    """
    q_ref  : [H, TQ,  dk] bf16   (scale already folded into W_Q)
    k_ref  : [H, TKV, dk] bf16
    v_ref  : [H, TKV, dk] bf16
    wo_ref : [H, dk, O_pad] bf16 (fc weight, head-major, lane-padded)
    out_ref: [TQ, O_pad] f32
    m/l/acc: f32 VMEM scratch, persistent across the KV grid axis.
    """
    f32, bf16 = jnp.float32, jnp.bfloat16
    ki = pl.program_id(1)

    @pl.when(ki == 0)
    def _():
        m_sc[...] = jnp.full(m_sc.shape, -1e30, f32)
        l_sc[...] = jnp.zeros(l_sc.shape, f32)
        acc_sc[...] = jnp.zeros(acc_sc.shape, f32)

    # scores for all heads in one batched MXU pass: [H, TQ, TKV]
    s = jnp.einsum('hqd,hkd->hqk', q_ref[...], k_ref[...],
                   preferred_element_type=f32)

    if mask_kv:  # static: only emitted when the sequence was padded
        kv_pos = ki * block_kv + jax.lax.broadcasted_iota(jnp.int32, s.shape, 2)
        s = jnp.where(kv_pos < seq_len, s, -1e30)

    # online (numerically-stable) softmax update
    m_prev = m_sc[...]
    m_new = jnp.maximum(m_prev, jnp.max(s, axis=-1, keepdims=True))
    alpha = jnp.exp(m_prev - m_new)
    p = jnp.exp(s - m_new)
    l_sc[...] = alpha * l_sc[...] + jnp.sum(p, axis=-1, keepdims=True)
    acc_sc[...] = alpha * acc_sc[...] + jnp.einsum(
        'hqk,hkd->hqd', p.astype(bf16), v_ref[...], preferred_element_type=f32)
    m_sc[...] = m_new

    @pl.when(ki == pl.num_programs(1) - 1)
    def _():
        inv = pl.reciprocal(l_sc[...], approx=True)           # [H, TQ, 1]  (EUP)
        ctx = (acc_sc[...] * inv).astype(bf16)                # [H, TQ, dk]
        # fc folded in, still head-batched: [H,TQ,dk] x [H,dk,O] -> sum over heads
        out_h = jnp.einsum('hqd,hdo->hqo', ctx, wo_ref[...],
                           preferred_element_type=f32)        # [H, TQ, O_pad]
        out_ref[...] = jnp.sum(out_h, axis=0)


# ---------------------------------------------------------------------------
# Wrapper
# ---------------------------------------------------------------------------
def multi_head_attention(x, wq, wk, wv, wo, *, n_heads, block_seq=128):
    """x: [S, D] f32.  wq/wk/wv: [D, H*dk] f32.  wo: [H*dk, out_dim] f32 (fc weight^T)."""
    S, D = x.shape
    H = n_heads
    dk = D // H
    O = wo.shape[1]
    bf16 = jnp.bfloat16

    # one tile size for both the Q rows and the KV stream; clamp for tiny sequences
    blk = min(block_seq, _round_up(S, 8))
    S_pad = _round_up(S, blk)
    O_pad = _round_up(O, 128)

    # ---- host-side weight / input prep (layout plumbing only) ----
    scale = 1.0 / math.sqrt(dk)
    w_fused = jnp.concatenate([wq * scale, wk, wv], axis=1).astype(bf16)  # [D, 3*H*dk]
    wo3 = jnp.pad(wo.reshape(H, dk, O), ((0, 0), (0, 0), (0, O_pad - O))).astype(bf16)
    x_pad = jnp.pad(x, ((0, S_pad - S), (0, 0))).astype(bf16)

    # ---- pass 1: Q|K|V projection, computed exactly once ----
    qkv = pl.pallas_call(
        qkv_proj_kernel,
        out_shape=jax.ShapeDtypeStruct((S_pad, 3 * H * dk), bf16),
        grid=(S_pad // blk,),
        in_specs=[
            pl.BlockSpec((blk, D), lambda i: (i, 0)),
            pl.BlockSpec((D, 3 * H * dk), lambda i: (0, 0)),
        ],
        out_specs=pl.BlockSpec((blk, 3 * H * dk), lambda i: (i, 0)),
        compiler_params=pltpu.CompilerParams(dimension_semantics=("parallel",)),
    )(x_pad, w_fused)

    # head-major views for the batched attention kernel (plain XLA layout op)
    qkv3 = qkv.reshape(S_pad, 3, H, dk).transpose(1, 2, 0, 3)  # [3, H, S_pad, dk]
    q3, k3, v3 = qkv3[0], qkv3[1], qkv3[2]

    # ---- pass 2: head-batched flash attention + fc ----
    kernel = functools.partial(attn_kernel, seq_len=S, block_kv=blk,
                               mask_kv=(S_pad != S))
    out_pad = pl.pallas_call(
        kernel,
        out_shape=jax.ShapeDtypeStruct((S_pad, O_pad), jnp.float32),
        grid=(S_pad // blk, S_pad // blk),
        in_specs=[
            pl.BlockSpec((H, blk, dk), lambda qi, ki: (0, qi, 0)),   # Q rows (tiled)
            pl.BlockSpec((H, blk, dk), lambda qi, ki: (0, ki, 0)),   # K stream
            pl.BlockSpec((H, blk, dk), lambda qi, ki: (0, ki, 0)),   # V stream
            pl.BlockSpec((H, dk, O_pad), lambda qi, ki: (0, 0, 0)),  # fc weight
        ],
        out_specs=pl.BlockSpec((blk, O_pad), lambda qi, ki: (qi, 0)),
        scratch_shapes=[
            pltpu.VMEM((H, blk, 1), jnp.float32),    # running max m
            pltpu.VMEM((H, blk, 1), jnp.float32),    # running denom l
            pltpu.VMEM((H, blk, dk), jnp.float32),   # running context acc
        ],
        compiler_params=pltpu.CompilerParams(
            dimension_semantics=("parallel", "arbitrary")),
    )(q3, k3, v3, wo3)

    return out_pad[:S, :O]


# ---------------------------------------------------------------------------
# Pure-JAX f32 reference mirroring the PyTorch forward.
# ---------------------------------------------------------------------------
def reference(x, wq, wk, wv, wo, *, n_heads):
    S, D = x.shape
    dk = D // n_heads
    Q = (x @ wq).reshape(S, n_heads, dk).transpose(1, 0, 2)
    K = (x @ wk).reshape(S, n_heads, dk).transpose(1, 0, 2)
    V = (x @ wv).reshape(S, n_heads, dk).transpose(1, 0, 2)
    scores = jnp.einsum("hqd,hkd->hqk", Q, K) / jnp.sqrt(jnp.float32(dk))
    attn = jax.nn.softmax(scores, axis=-1)
    ctx = jnp.einsum("hqk,hkd->hqd", attn, V)
    ctx = ctx.transpose(1, 0, 2).reshape(S, n_heads * dk)
    return ctx @ wo


if __name__ == "__main__":
    # small shapes consistent with the module: seq=16, input_dim=32, n_heads=4 (d_k=8),
    # output_dim defaults to input_dim.
    seq, input_dim, n_heads = 16, 32, 4
    d_k = input_dim // n_heads
    out_dim = input_dim

    key = jax.random.PRNGKey(0)
    kx, kq, kk, kv, ko = jax.random.split(key, 5)

    x = jax.random.normal(kx, (seq, input_dim), dtype=jnp.float32)
    wq = jax.random.normal(kq, (input_dim, n_heads * d_k), jnp.float32) / math.sqrt(input_dim)
    wk = jax.random.normal(kk, (input_dim, n_heads * d_k), jnp.float32) / math.sqrt(input_dim)
    wv = jax.random.normal(kv, (input_dim, n_heads * d_k), jnp.float32) / math.sqrt(input_dim)
    wo = jax.random.normal(ko, (n_heads * d_k, out_dim), jnp.float32) / math.sqrt(n_heads * d_k)

    out = multi_head_attention(x, wq, wk, wv, wo, n_heads=n_heads)
    jax.block_until_ready(out)

    ref = reference(x, wq, wk, wv, wo, n_heads=n_heads)
    # accepted tolerance: bf16 MXU operands + approx EUP reciprocal vs f32 reference
    np.testing.assert_allclose(np.asarray(out), np.asarray(ref), rtol=5e-2, atol=5e-2)

    print("KERNEL_OK")
</pallas_src>

<mosaic_0001>
module attributes {stable_mosaic.version = 11 : i64} {
  func.func @qkv_proj_kernel(%arg0: i32, %arg1: memref<16x32xbf16, #tpu.memory_space<vmem>>, %arg2: memref<32x96xbf16, #tpu.memory_space<vmem>>, %arg3: memref<16x96xbf16, #tpu.memory_space<vmem>>) attributes {dimension_semantics = [#tpu.dimension_semantics<parallel>], iteration_bounds = array<i64: 1>, scalar_prefetch = 0 : i64, scratch_operands = 0 : i64, tpu.core_type = #tpu.core_type<tc>, window_params = [{transform_indices = @transform_0, window_bounds = array<i64: 16, 32>}, {pipeline_mode = #tpu.pipeline_mode<synchronous>, transform_indices = @transform_1, window_bounds = array<i64: 32, 96>}, {transform_indices = @transform_2, window_bounds = array<i64: 16, 96>}]} {
    %c0 = arith.constant 0 : index
    %c0_0 = arith.constant 0 : index
    %0 = vector.load %arg1[%c0, %c0_0] : memref<16x32xbf16, #tpu.memory_space<vmem>>, vector<16x32xbf16>
    %c0_1 = arith.constant 0 : index
    %c0_2 = arith.constant 0 : index
    %1 = vector.load %arg2[%c0_1, %c0_2] : memref<32x96xbf16, #tpu.memory_space<vmem>>, vector<32x96xbf16>
    %cst = arith.constant dense<0.000000e+00> : vector<16x96xf32>
    %2 = tpu.matmul %0, %1, %cst {dimension_numbers = #tpu.dot_dimension_numbers<[1], [0], [0], [1], [0, 0, 1, 1], [], []>} : vector<16x32xbf16>, vector<32x96xbf16>, vector<16x96xf32> -> vector<16x96xf32>
    %3 = arith.truncf %2 : vector<16x96xf32> to vector<16x96xbf16>
    %c0_3 = arith.constant 0 : index
    %c0_4 = arith.constant 0 : index
    %4 = vector.load %arg3[%c0_3, %c0_4] : memref<16x96xbf16, #tpu.memory_space<vmem>>, vector<16x96xbf16>
    tpu.vector_store %arg3[%c0_3, %c0_4], %3 {strides = array<i32>} : memref<16x96xbf16, #tpu.memory_space<vmem>>, vector<16x96xbf16>,
    return
  }
  func.func @transform_0(%arg0: i32) -> (i32, i32) {
    %c0_i32 = arith.constant 0 : i32
    %c0_i32_0 = arith.constant 0 : i32
    return %arg0, %c0_i32 : i32, i32
  }
  func.func @transform_1(%arg0: i32) -> (i32, i32) {
    %c0_i32 = arith.constant 0 : i32
    %c0_i32_0 = arith.constant 0 : i32
    %c0_i32_1 = arith.constant 0 : i32
    return %c0_i32, %c0_i32_0 : i32, i32
  }
  func.func @transform_2(%arg0: i32) -> (i32, i32) {
    %c0_i32 = arith.constant 0 : i32
    %c0_i32_0 = arith.constant 0 : i32
    return %arg0, %c0_i32 : i32, i32
  }
}

</mosaic_0001>

<llo_original>
// kernel: tpu_custom_call.1
$region0: #{tpu_custom_call.1}
  #allocation0 [shape = 'u32[]', space=smem, size = 0x4, offset = 0x4, fixed_abs, tag = 'smem constant byte address 0x4 - core index']
  #allocation1 [shape = 'u32[144,128]{1,0:T(1,128)}', space=vmem, size = 0x12000, scoped, tag = 'internal scratch']
  %s0 = inlined_call_operand.hbm [shape: bf16[16,32], index: 0, kind: input, shape index: {}]
  %s1 = inlined_call_operand.hbm [shape: bf16[32,96], index: 1, kind: input, shape index: {}]
  %s2 = inlined_call_operand.hbm [shape: bf16[16,96], index: 2, kind: output, shape index: {}]
  %s3 = sld [smem:[#allocation0]]
  $region26: #{tpu_custom_call.1} parent=0
    _
  %s5 = ssub.s32 1, %s3
  %s6 = scalar_select 0, %s5, %s3
  $region1: #{tpu_custom_call.1} parent=0
    #allocation2 [shape = 'u8[4096]{0}', space=vmem, size = 0x1000, scoped, tag = 'input window, operand 0, single buffered']
    #allocation3 [shape = 's32[1]{0}', space=sflag, size = 0x4, scoped, tag = 'scoped memory for tpu_custom_call.1']
    #allocation4 [shape = 's32[1]{0}', space=sflag, size = 0x4, scoped, tag = 'scoped memory for tpu_custom_call.1']
    #allocation5 [shape = 'u8[8192]{0}', space=vmem, size = 0x2000, scoped, tag = 'input window, operand 1, single buffered']
    #allocation6 [shape = 's32[1]{0}', space=sflag, size = 0x4, scoped, tag = 'scoped memory for tpu_custom_call.1']
    #allocation7 [shape = 'u8[4096]{0}', space=vmem, size = 0x1000, scoped, tag = 'output window, operand 0, single buffered']
    %7 = vsyncpa [#allocation3], 0
    %8 = vsyncpa [#allocation6], 0
    %9 = vsyncpa [#allocation4], 0
    // Predicated region
    $region2: #{tpu_custom_call.1} parent=1 // pred_check
      _
    $region3: #{tpu_custom_call.1} parent=1 // pred_check_branch
      %11 = sbr.rel (0) target = $region5
    $region4: #{tpu_custom_call.1} parent=1 // pred_region
      %s13 = ssub.s32 128, 128
      %14 = vsyncadd [#allocation3], %s13
      %s15 = sshll.u32 [#allocation2], 4
      %s16 = int_to_ptr.vmem [resolvable:$true] %s15
      %21 = dma.hbm_to_vmem [thread:$0]  %s0, 128, %s16, [#allocation3], 64, 64, 4
    $region5: #{tpu_custom_call.1} parent=1 // pred_fallthru
      _
    // Predicated region
    $region6: #{tpu_custom_call.1} parent=1 // pred_check
      _
    $region7: #{tpu_custom_call.1} parent=1 // pred_check_branch
      %23 = sbr.rel (0) target = $region9
    $region8: #{tpu_custom_call.1} parent=1 // pred_region
      %s25 = ssub.s32 256, 256
      %26 = vsyncadd [#allocation6], %s25
      %s27 = sshll.u32 [#allocation5], 4
      %s28 = int_to_ptr.vmem [resolvable:$true] %s27
      %33 = dma.hbm_to_vmem [thread:$0]  %s1, 256, %s28, [#allocation6], 64, 64, 4
    $region9: #{tpu_custom_call.1} parent=1 // pred_fallthru
      _
    // Predicated region
    $region10: #{tpu_custom_call.1} parent=1 // pred_check
      _
    $region11: #{tpu_custom_call.1} parent=1 // pred_check_branch
      %35 = sbr.rel (0) target = $region13
    $region12: #{tpu_custom_call.1} parent=1 // pred_region
      %36 = dma.done [#allocation3], 128
    $region13: #{tpu_custom_call.1} parent=1 // pred_fallthru
      _
    // Predicated region
    $region14: #{tpu_custom_call.1} parent=1 // pred_check
      _
    $region15: #{tpu_custom_call.1} parent=1 // pred_check_branch
      %38 = sbr.rel (0) target = $region17
    $region16: #{tpu_custom_call.1} parent=1 // pred_region
      %39 = dma.done [#allocation6], 256
    $region17: #{tpu_custom_call.1} parent=1 // pred_fallthru
      _
    %v41 = vld [vmem:[#allocation2] sm:$0xf]
    %v42 = vld [vmem:[#allocation2 + $0x4] sm:$0xf]
    %v43 = vld [vmem:[#allocation5] sm:$0xf]
    %v44 = vld [vmem:[#allocation5 + $0x4] sm:$0xf]
    %v45 = vld [vmem:[#allocation5 + $0x8] sm:$0xf]
    %v46 = vld [vmem:[#allocation5 + $0xc] sm:$0xf]
    %v49 = vunpack.c.l.b16 %v41
    %v50 = vunpack.c.l.b16 %v42
    %v51 = vpack.c.b16 %v50, %v49
    %v56 = vunpack.c.l.b16 %v43
    %v57 = vunpack.c.l.b16 %v44
    %v58 = vunpack.c.l.b16 %v45
    %v59 = vunpack.c.l.b16 %v46
    %v60 = vpack.c.b16 %v57, %v56
    %v61 = vpack.c.b16 %v59, %v58
    %vm64 = vcmask 261120
    %v66 = vsel %vm64, %v51, 0
    %68 = vmatprep.subr.bf16.mxu0 0
    %69 = vmatpush1.bf16.msra.mxu0 0
    %70 = vmatprep.subr.bf16.mxu0 0
    %71 = vmatpush1.bf16.msra.mxu0 0
    %72 = vmatprep.subr.bf16.mxu0 0
    %73 = vmatpush1.bf16.msra.mxu0 0
    %74 = vmatprep.subr.bf16.mxu0 0
    %75 = vmatpush1.bf16.msra.mxu0 0
    %76 = vmatprep.subr.bf16.mxu0 0
    %77 = vmatpush1.bf16.msra.mxu0 0
    %78 = vmatprep.subr.bf16.mxu0 0
    %79 = vmatpush1.bf16.msra.mxu0 0
    %80 = vmatprep.subr.bf16.mxu0 0
    %81 = vmatpush1.bf16.msra.mxu0 %v61
    %82 = vmatprep.subr.bf16.mxu0 0
    %83 = vmatpush1.bf16.msra.mxu0 %v60
    %84 = vmatprep.subr.bf16.mxu0 0
    %85 = vmatpush2.bf16.msra.mxu0 0
    %86 = vmatprep.subr.bf16.mxu0 0
    %87 = vmatpush2.bf16.msra.mxu0 0
    %88 = vmatprep.subr.bf16.mxu0 0
    %89 = vmatpush2.bf16.msra.mxu0 0
    %90 = vmatprep.subr.bf16.mxu0 0
    %91 = vmatpush2.bf16.msra.mxu0 0
    %92 = vmatprep.subr.bf16.mxu0 0
    %93 = vmatpush2.bf16.msra.mxu0 0
    %94 = vmatprep.subr.bf16.mxu0 0
    %95 = vmatpush2.bf16.msra.mxu0 0
    %96 = vmatprep.subr.bf16.mxu0 0
    %97 = vmatpush2.bf16.msra.mxu0 0
    %98 = vmatprep.subr.bf16.mxu0 0
    %99 = vmatpush2.bf16.msra.mxu0 0
    %100 = vmatprep.mubr.bf16.mxu0 0
    %101 = vmatmul.mubr.bf16.gmra.mxu0 %v66
    %v102 = vpop.f32.mrf.mxu0
    %v103 = vadd.f32 0.0, %v102
    %v104 = vpop.f32.mrf.mxu0
    %v105 = vpop.f32.mrf.mxu0
    %v106 = vadd.f32 0.0, %v105
    %v107 = vpop.f32.mrf.mxu0
    %108 = vdwg.mxu0
    %v109 = vpack.c.bf16 %v106, %v103
    %v111 = vunpack.c.l.b16 %v109
    %v112 = vunpack.c.h.b16 %v109
    %v113 = vpack.c.b16 %v111, %v111
    %v114 = vpack.c.b16 %v112, %v112
    %vm117 = vcmask 781312
    %118 = vst.msk [vmem:[#allocation7] sm:$0xf] %vm117, %v113
    %119 = vst.msk [vmem:[#allocation7 + $0x4] sm:$0xf] %vm117, %v114
    // Predicated region
    $region18: #{tpu_custom_call.1} parent=1 // pred_check
      _
    $region19: #{tpu_custom_call.1} parent=1 // pred_check_branch
      %121 = sbr.rel (0) target = $region21
    $region20: #{tpu_custom_call.1} parent=1 // pred_region
      %s123 = ssub.s32 128, 128
      %124 = vsyncadd [#allocation4], %s123
      %s125 = sshll.u32 [#allocation7], 4
      %s126 = int_to_ptr.vmem [resolvable:$true] %s125
      %131 = dma.vmem_to_hbm [thread:$0]  %s126, 128, %s2, [#allocation4], 64, 64, 4
    $region21: #{tpu_custom_call.1} parent=1 // pred_fallthru
      _
    // Predicated region
    $region22: #{tpu_custom_call.1} parent=1 // pred_check
      _
    $region23: #{tpu_custom_call.1} parent=1 // pred_check_branch
      %133 = sbr.rel (0) target = $region25
    $region24: #{tpu_custom_call.1} parent=1 // pred_region
      %134 = dma.done [#allocation4], 128
    $region25: #{tpu_custom_call.1} parent=1 // pred_fallthru
      _
    %135 = vsyncpa [#allocation3], 1
    %136 = vsyncpa [#allocation6], 1
    %137 = vsyncpa [#allocation4], 1

</llo_original>
